<compile_context>
chip_gen: v7x
topology: tpu7x:2x2x1
jax: 0.10.0
libtpu: 0.0.40
codegen_flags: <defaults>
</compile_context>

<pallas_src>
import functools

import jax
import jax.numpy as jnp
from jax.experimental import pallas as pl
from jax.experimental.pallas import tpu as pltpu

LANES = 128
SUBLANES = 8
MAX_BLOCK_ROWS = 1024      # (1024, 128) f32 = 512 KiB/block; 1 MiB double-buffered.


def _round_up(x, m):
    return ((x + m - 1) // m) * m


def _fused_reduce_kernel(pid_ref, first_ref, last_ref, x_ref,
                         sumabs_ref, count_ref, acc_sum, acc_cnt):
    """Streams one (block_rows, 128) tile; accumulates per-parameter partials.

    pid_ref/first_ref/last_ref : SMEM int32 per-block tables (scalar prefetch)
    x_ref     : VMEM (block_rows, LANES) tile of the packed, zero-padded params
    sumabs_ref, count_ref : (1, SUBLANES, LANES) per-parameter output blocks
    acc_sum, acc_cnt      : (SUBLANES, LANES) f32 VMEM accumulators (persist
                            across grid steps; reset at each parameter's first block)
    """
    i = pl.program_id(0)

    @pl.when(first_ref[i] == 1)
    def _init():
        acc_sum[...] = jnp.zeros_like(acc_sum)
        acc_cnt[...] = jnp.zeros_like(acc_cnt)

    ax = jnp.abs(x_ref[...].astype(jnp.float32))       # (block_rows, 128)
    ax3 = ax.reshape(-1, SUBLANES, LANES)               # vreg-aligned regrouping
    acc_sum[...] += jnp.sum(ax3, axis=0)                # vreg-wise adds (VPU)
    # Zero padding contributes 0 to both sum(|x|) and the nonzero count.
    # (NaN entries count as "zero", matching the PyTorch `abs(x) > 0` behaviour.)
    acc_cnt[...] += jnp.sum(jnp.where(ax3 > 0.0, 1.0, 0.0), axis=0)

    @pl.when(last_ref[i] == 1)
    def _store():
        sumabs_ref[0] = acc_sum[...]
        count_ref[0] = acc_cnt[...]


@functools.partial(jax.jit,
                   static_argnames=("block_rows", "resolution_factor",
                                    "box_size", "alpha", "beta"))
def _fused_core(big_params, lambda_l1, progress_factor, *,
                block_rows, resolution_factor, box_size, alpha, beta):
    num_params = len(big_params)
    block_elems = block_rows * LANES

    dtypes = {jnp.dtype(p.dtype) for p in big_params}
    packed_dtype = dtypes.pop() if len(dtypes) == 1 else jnp.dtype(jnp.float32)

    sizes = [int(p.size) for p in big_params]
    nbs = [max(1, pl.cdiv(n, block_elems)) for n in sizes]
    total_blocks = sum(nbs)

    # Static per-block tables (land in SMEM via scalar prefetch).
    pid_l, first_l, last_l = [], [], []
    for p_idx, nb in enumerate(nbs):
        pid_l += [p_idx] * nb
        first_l += [1] + [0] * (nb - 1)
        last_l += [0] * (nb - 1) + [1]
    pid = jnp.asarray(pid_l, jnp.int32)
    first = jnp.asarray(first_l, jnp.int32)
    last = jnp.asarray(last_l, jnp.int32)

    # One packed, zero-padded 2-D buffer for all parameters (single XLA pass;
    # params are kept in their common native dtype and cast to f32 in-kernel).
    chunks = []
    for p, n, nb in zip(big_params, sizes, nbs):
        flat = p.reshape(-1).astype(packed_dtype)
        chunks.append(jnp.pad(flat, (0, nb * block_elems - n)))
    packed = jnp.concatenate(chunks).reshape(total_blocks * block_rows, LANES)

    out_blk = (1, SUBLANES, LANES)
    cost = pl.CostEstimate(
        flops=3 * total_blocks * block_elems,
        transcendentals=0,
        bytes_accessed=int(packed.size) * packed.dtype.itemsize
                       + 2 * num_params * SUBLANES * LANES * 4)

    sumabs_blocks, count_blocks = pl.pallas_call(
        _fused_reduce_kernel,
        out_shape=(
            jax.ShapeDtypeStruct((num_params, SUBLANES, LANES), jnp.float32),
            jax.ShapeDtypeStruct((num_params, SUBLANES, LANES), jnp.float32),
        ),
        grid_spec=pltpu.PrefetchScalarGridSpec(
            num_scalar_prefetch=3,
            grid=(total_blocks,),
            in_specs=[pl.BlockSpec((block_rows, LANES),
                                   lambda i, pid, first, last: (i, 0))],
            out_specs=(
                pl.BlockSpec(out_blk, lambda i, pid, first, last: (pid[i], 0, 0)),
                pl.BlockSpec(out_blk, lambda i, pid, first, last: (pid[i], 0, 0)),
            ),
            scratch_shapes=[pltpu.VMEM((SUBLANES, LANES), jnp.float32),
                            pltpu.VMEM((SUBLANES, LANES), jnp.float32)]),
        compiler_params=pltpu.CompilerParams(
            dimension_semantics=("arbitrary",),
            vmem_limit_bytes=32 * 1024 * 1024),
        cost_estimate=cost,
    )(pid, first, last, packed)

    # Final per-parameter reductions (1024 partial lanes each) in plain JAX.
    sum_abs = jnp.sum(sumabs_blocks, axis=(1, 2))   # (P,)
    nz_all = jnp.sum(count_blocks, axis=(1, 2))     # (P,)

    fractal = jnp.float32(0.0)
    multi = jnp.float32(0.0)
    for idx, (p, n) in enumerate(zip(big_params, sizes)):
        num_boxes = n // box_size
        limit = num_boxes * box_size
        # box_counting drops the last (n - limit) < box_size elements: fix up the
        # kernel's "count everything" total with a <= 2-element slice.
        if limit < n:
            tail = p.reshape(-1)[limit:n].astype(jnp.float32)
            tail_nz = jnp.sum((jnp.abs(tail) > 0).astype(jnp.float32))
        else:
            tail_nz = jnp.float32(0.0)
        nz_boxes = nz_all[idx] - tail_nz

        fractal = (fractal + sum_abs[idx] ** 2) * lambda_l1   # compounding, as in PyTorch
        # num_boxes == 0 reproduces PyTorch's NaN (mean of an empty tensor).
        if num_boxes > 0:
            mean_boxes = nz_boxes / jnp.float32(num_boxes)
        else:
            mean_boxes = jnp.float32(jnp.nan)
        multi = multi + mean_boxes ** resolution_factor

    return (alpha * progress_factor) * fractal + (beta * progress_factor) * multi


def fractal_regularization_loss(params, lambda_l1, epoch, total_epochs,
                                alpha=0.1, beta=0.01, resolution_factor=2,
                                box_size=3):
    """Pallas-backed equivalent of ComplexFractalRegularizationLoss.forward."""
    progress_factor = jnp.float32(1.0 - epoch / total_epochs)
    big = tuple(p for p in params if p.ndim > 1)
    if not big:
        return jnp.float32(0.0)

    dtypes = {jnp.dtype(p.dtype) for p in big}
    packed_dtype = dtypes.pop() if len(dtypes) == 1 else jnp.dtype(jnp.float32)
    # Native-dtype sublane multiple: f32 -> 8 rows, bf16 -> 16, int8 -> 32.
    row_mult = SUBLANES * max(1, 4 // packed_dtype.itemsize)

    # Biggest block that is useful: cap at MAX_BLOCK_ROWS (fits all VMEM budgets
    # incl. v7x), shrink for tiny models so per-parameter padding stays small.
    max_rows = max(pl.cdiv(int(p.size), LANES) for p in big)
    block_rows = min(MAX_BLOCK_ROWS, _round_up(max_rows, row_mult))

    return _fused_core(big, jnp.asarray(lambda_l1, jnp.float32), progress_factor,
                       block_rows=block_rows,
                       resolution_factor=resolution_factor, box_size=box_size,
                       alpha=float(alpha), beta=float(beta))


def _reference_loss(params, lambda_l1, epoch, total_epochs,
                    alpha=0.1, beta=0.01, resolution_factor=2, box_size=3):
    """Plain-JAX reference mirroring the PyTorch code exactly."""
    progress_factor = 1.0 - epoch / total_epochs
    fractal = jnp.float32(0.0)
    multi = jnp.float32(0.0)
    for p in params:
        if p.ndim <= 1:
            continue
        flat = p.reshape(-1).astype(jnp.float32)
        num_boxes = flat.size // box_size
        limit = num_boxes * box_size
        counts_mean = jnp.sum((jnp.abs(flat[:limit]) > 0).astype(jnp.float32)) / num_boxes
        fractal = (fractal + jnp.sum(jnp.abs(flat)) ** 2) * lambda_l1
        multi = multi + counts_mean ** resolution_factor
    return jnp.float32(alpha * progress_factor) * fractal + \
           jnp.float32(beta * progress_factor) * multi


if __name__ == "__main__":
    key = jax.random.PRNGKey(0)
    k1, k2, k3 = jax.random.split(key, 3)

    # Synthetic "model" parameters (deterministic init).
    conv_w = jax.random.normal(k1, (4, 4, 3, 3), dtype=jnp.float32)   # (O, I, kH, kW)
    lin_w = jax.random.normal(k2, (32, 16), dtype=jnp.float32)        # (out, in)
    bias = jax.random.normal(k3, (4,), dtype=jnp.float32)             # ndim==1 -> skipped

    # Introduce deterministic exact zeros so the box-counting path is nontrivial.
    def sparsify(w):
        flat = w.reshape(-1)
        idx = jnp.arange(flat.size)
        return jnp.where(idx % 5 == 0, 0.0, flat).reshape(w.shape)

    conv_w = sparsify(conv_w)
    lin_w = sparsify(lin_w)

    params = [conv_w, bias, lin_w]
    lambda_l1 = jnp.float32(0.1)   # nn.Parameter(torch.tensor(0.1))
    epoch, total_epochs = 3, 10

    loss = fractal_regularization_loss(params, lambda_l1, epoch, total_epochs)
    loss = jax.block_until_ready(loss)

    ref = _reference_loss(params, lambda_l1, epoch, total_epochs)
    assert jnp.allclose(loss, ref, rtol=1e-5, atol=1e-5), (loss, ref)

    print("KERNEL_OK")
</pallas_src>

<mosaic_0001>
module attributes {stable_mosaic.version = 11 : i64} {
  func.func @_fused_reduce_kernel(%arg0: i32, %arg1: memref<2xi32, #tpu.memory_space<smem>>, %arg2: memref<2xi32, #tpu.memory_space<smem>>, %arg3: memref<2xi32, #tpu.memory_space<smem>>, %arg4: memref<8x128xf32, #tpu.memory_space<vmem>>, %arg5: memref<1x8x128xf32, #tpu.memory_space<vmem>>, %arg6: memref<1x8x128xf32, #tpu.memory_space<vmem>>, %arg7: memref<8x128xf32, #tpu.memory_space<vmem>>, %arg8: memref<8x128xf32, #tpu.memory_space<vmem>>) attributes {dimension_semantics = [#tpu.dimension_semantics<arbitrary>], iteration_bounds = array<i64: 2>, scalar_prefetch = 3 : i64, scratch_operands = 2 : i64, tpu.core_type = #tpu.core_type<tc>, window_params = [{transform_indices = @transform_0, window_bounds = array<i64: 8, 128>}, {transform_indices = @transform_1, window_bounds = array<i64: 1, 8, 128>}, {transform_indices = @transform_2, window_bounds = array<i64: 1, 8, 128>}]} {
    %0 = arith.index_cast %arg0 : i32 to index
    %1 = memref.load %arg2[%0] : memref<2xi32, #tpu.memory_space<smem>>
    %c1_i32 = arith.constant 1 : i32
    %2 = arith.cmpi eq, %1, %c1_i32 : i32
    %3 = arith.extui %2 : i1 to i32
    %c0_i32 = arith.constant 0 : i32
    %4 = arith.cmpi ne, %3, %c0_i32 : i32
    scf.if %4 {
      %cst_15 = arith.constant 0.000000e+00 : f32
      %26 = vector.broadcast %cst_15 : f32 to vector<8x128xf32>
      %c0_16 = arith.constant 0 : index
      %c0_17 = arith.constant 0 : index
      %27 = vector.load %arg7[%c0_16, %c0_17] : memref<8x128xf32, #tpu.memory_space<vmem>>, vector<8x128xf32>
      tpu.vector_store %arg7[%c0_16, %c0_17], %26 {strides = array<i32>} : memref<8x128xf32, #tpu.memory_space<vmem>>, vector<8x128xf32>,
      %cst_18 = arith.constant 0.000000e+00 : f32
      %28 = vector.broadcast %cst_18 : f32 to vector<8x128xf32>
      %c0_19 = arith.constant 0 : index
      %c0_20 = arith.constant 0 : index
      %29 = vector.load %arg8[%c0_19, %c0_20] : memref<8x128xf32, #tpu.memory_space<vmem>>, vector<8x128xf32>
      tpu.vector_store %arg8[%c0_19, %c0_20], %28 {strides = array<i32>} : memref<8x128xf32, #tpu.memory_space<vmem>>, vector<8x128xf32>,
    } else {
    }
    %c0 = arith.constant 0 : index
    %c0_0 = arith.constant 0 : index
    %5 = vector.load %arg4[%c0, %c0_0] : memref<8x128xf32, #tpu.memory_space<vmem>>, vector<8x128xf32>
    %6 = math.absf %5 : vector<8x128xf32>
    %7 = vector.shape_cast %6 : vector<8x128xf32> to vector<1x8x128xf32>
    %c0_1 = arith.constant 0 : index
    %c0_2 = arith.constant 0 : index
    %8 = vector.load %arg7[%c0_1, %c0_2] : memref<8x128xf32, #tpu.memory_space<vmem>>, vector<8x128xf32>
    %cst = arith.constant dense<0.000000e+00> : vector<8x128xf32>
    %9 = vector.multi_reduction <add>, %7, %cst [0] : vector<1x8x128xf32> to vector<8x128xf32>
    %10 = arith.addf %8, %9 : vector<8x128xf32>
    %c0_3 = arith.constant 0 : index
    %c0_4 = arith.constant 0 : index
    %11 = vector.load %arg7[%c0_3, %c0_4] : memref<8x128xf32, #tpu.memory_space<vmem>>, vector<8x128xf32>
    tpu.vector_store %arg7[%c0_3, %c0_4], %10 {strides = array<i32>} : memref<8x128xf32, #tpu.memory_space<vmem>>, vector<8x128xf32>,
    %c0_5 = arith.constant 0 : index
    %c0_6 = arith.constant 0 : index
    %12 = vector.load %arg8[%c0_5, %c0_6] : memref<8x128xf32, #tpu.memory_space<vmem>>, vector<8x128xf32>
    %cst_7 = arith.constant 0.000000e+00 : f32
    %13 = vector.broadcast %cst_7 : f32 to vector<1x8x128xf32>
    %14 = arith.cmpf ogt, %7, %13 : vector<1x8x128xf32>
    %cst_8 = arith.constant 1.000000e+00 : f32
    %cst_9 = arith.constant 0.000000e+00 : f32
    %15 = vector.broadcast %cst_8 : f32 to vector<1x8x128xf32>
    %16 = vector.broadcast %cst_9 : f32 to vector<1x8x128xf32>
    %17 = arith.select %14, %15, %16 : vector<1x8x128xi1>, vector<1x8x128xf32>
    %cst_10 = arith.constant dense<0.000000e+00> : vector<8x128xf32>
    %18 = vector.multi_reduction <add>, %17, %cst_10 [0] : vector<1x8x128xf32> to vector<8x128xf32>
    %19 = arith.addf %12, %18 : vector<8x128xf32>
    %c0_11 = arith.constant 0 : index
    %c0_12 = arith.constant 0 : index
    %20 = vector.load %arg8[%c0_11, %c0_12] : memref<8x128xf32, #tpu.memory_space<vmem>>, vector<8x128xf32>
    tpu.vector_store %arg8[%c0_11, %c0_12], %19 {strides = array<i32>} : memref<8x128xf32, #tpu.memory_space<vmem>>, vector<8x128xf32>,
    %21 = arith.index_cast %arg0 : i32 to index
    %22 = memref.load %arg3[%21] : memref<2xi32, #tpu.memory_space<smem>>
    %c1_i32_13 = arith.constant 1 : i32
    %23 = arith.cmpi eq, %22, %c1_i32_13 : i32
    %24 = arith.extui %23 : i1 to i32
    %c0_i32_14 = arith.constant 0 : i32
    %25 = arith.cmpi ne, %24, %c0_i32_14 : i32
    scf.if %25 {
      %c0_15 = arith.constant 0 : index
      %c0_16 = arith.constant 0 : index
      %26 = vector.load %arg7[%c0_15, %c0_16] : memref<8x128xf32, #tpu.memory_space<vmem>>, vector<8x128xf32>
      %c0_17 = arith.constant 0 : index
      %c0_18 = arith.constant 0 : index
      %c0_19 = arith.constant 0 : index
      %27 = vector.load %arg5[%c0_17, %c0_18, %c0_19] : memref<1x8x128xf32, #tpu.memory_space<vmem>>, vector<1x8x128xf32>
      %28 = vector.shape_cast %27 : vector<1x8x128xf32> to vector<8x128xf32>
      %29 = vector.shape_cast %26 : vector<8x128xf32> to vector<1x8x128xf32>
      tpu.vector_store %arg5[%c0_17, %c0_18, %c0_19], %29 {strides = array<i32>} : memref<1x8x128xf32, #tpu.memory_space<vmem>>, vector<1x8x128xf32>,
      %c0_20 = arith.constant 0 : index
      %c0_21 = arith.constant 0 : index
      %30 = vector.load %arg8[%c0_20, %c0_21] : memref<8x128xf32, #tpu.memory_space<vmem>>, vector<8x128xf32>
      %c0_22 = arith.constant 0 : index
      %c0_23 = arith.constant 0 : index
      %c0_24 = arith.constant 0 : index
      %31 = vector.load %arg6[%c0_22, %c0_23, %c0_24] : memref<1x8x128xf32, #tpu.memory_space<vmem>>, vector<1x8x128xf32>
      %32 = vector.shape_cast %31 : vector<1x8x128xf32> to vector<8x128xf32>
      %33 = vector.shape_cast %30 : vector<8x128xf32> to vector<1x8x128xf32>
      tpu.vector_store %arg6[%c0_22, %c0_23, %c0_24], %33 {strides = array<i32>} : memref<1x8x128xf32, #tpu.memory_space<vmem>>, vector<1x8x128xf32>,
    } else {
    }
    return
  }
  func.func @transform_0(%arg0: i32, %arg1: memref<2xi32, #tpu.memory_space<smem>>, %arg2: memref<2xi32, #tpu.memory_space<smem>>, %arg3: memref<2xi32, #tpu.memory_space<smem>>) -> (i32, i32) {
    %c0_i32 = arith.constant 0 : i32
    %c0_i32_0 = arith.constant 0 : i32
    return %arg0, %c0_i32 : i32, i32
  }
  func.func @transform_1(%arg0: i32, %arg1: memref<2xi32, #tpu.memory_space<smem>>, %arg2: memref<2xi32, #tpu.memory_space<smem>>, %arg3: memref<2xi32, #tpu.memory_space<smem>>) -> (i32, i32, i32) {
    %0 = arith.index_cast %arg0 : i32 to index
    %1 = memref.load %arg1[%0] : memref<2xi32, #tpu.memory_space<smem>>
    %c0_i32 = arith.constant 0 : i32
    %c0_i32_0 = arith.constant 0 : i32
    %c0_i32_1 = arith.constant 0 : i32
    return %1, %c0_i32, %c0_i32_0 : i32, i32, i32
  }
  func.func @transform_2(%arg0: i32, %arg1: memref<2xi32, #tpu.memory_space<smem>>, %arg2: memref<2xi32, #tpu.memory_space<smem>>, %arg3: memref<2xi32, #tpu.memory_space<smem>>) -> (i32, i32, i32) {
    %0 = arith.index_cast %arg0 : i32 to index
    %1 = memref.load %arg1[%0] : memref<2xi32, #tpu.memory_space<smem>>
    %c0_i32 = arith.constant 0 : i32
    %c0_i32_0 = arith.constant 0 : i32
    %c0_i32_1 = arith.constant 0 : i32
    return %1, %c0_i32, %c0_i32_0 : i32, i32, i32
  }
}

</mosaic_0001>

<llo_original>
// kernel: _fused_core.1
$region0: #{_fused_core.1}
  #allocation0 [shape = 'u32[]', space=smem, size = 0x4, offset = 0x4, fixed_abs, tag = 'smem constant byte address 0x4 - core index']
  #allocation1 [shape = 'u32[144,128]{1,0:T(1,128)}', space=vmem, size = 0x12000, scoped, tag = 'internal scratch']
  #allocation2 [shape = 'f32[8,128]{1,0:T(8,128)}', space=vmem, size = 0x1000, scoped, tag = 'scratch operand']
  #allocation3 [shape = 'f32[8,128]{1,0:T(8,128)}', space=vmem, size = 0x1000, scoped, tag = 'scratch operand']
  #allocation4 [shape = 's32[1]{0}', space=sflag, size = 0x4, scoped, tag = 'scoped memory for _fused_core.1']
  #allocation5 [shape = 'u8[512]{0}', space=smem, size = 0x200, scoped, tag = 'prefetched SMEM operand 0']
  #allocation6 [shape = 'u8[512]{0}', space=smem, size = 0x200, scoped, tag = 'prefetched SMEM operand 1']
  #allocation7 [shape = 'u8[512]{0}', space=smem, size = 0x200, scoped, tag = 'prefetched SMEM operand 2']
  %s0 = inlined_call_operand.vmem [shape: s32[2], index: 0, kind: input, shape index: {}]
  %s1 = inlined_call_operand.vmem [shape: s32[2], index: 1, kind: input, shape index: {}, may-alias: {1,2}]
  %s2 = inlined_call_operand.vmem [shape: s32[2], index: 2, kind: input, shape index: {}, may-alias: {1,2}]
  %s3 = inlined_call_operand.vmem [shape: f32[16,128], index: 3, kind: input, shape index: {}]
  %s4 = inlined_call_operand.vmem [shape: f32[2,8,128], index: 4, kind: output, shape index: {0}]
  %s5 = inlined_call_operand.vmem [shape: f32[2,8,128], index: 5, kind: output, shape index: {1}]
  %6 = xla_tuple %s4, %s5
  %s7 = sld [smem:[#allocation0]]
  $region53: #{_fused_core.1} parent=0
    _
  %s9 = ssub.s32 1, %s7
  %s10 = scalar_select 0, %s9, %s7
  %s11 = sshll.u32 %s0, 4
  %s12 = int_to_ptr.vmem [resolvable:$true] %s11
  %14 = dma.vmem_to_smem %s12, 16, [#allocation5], [#allocation4]
  %s15 = sshll.u32 %s1, 4
  %s16 = int_to_ptr.vmem [resolvable:$true] %s15
  %18 = dma.vmem_to_smem %s16, 16, [#allocation6], [#allocation4]
  %s19 = sshll.u32 %s2, 4
  %s20 = int_to_ptr.vmem [resolvable:$true] %s19
  %22 = dma.vmem_to_smem %s20, 16, [#allocation7], [#allocation4]
  %23 = dma.done [#allocation4], 48
  %24 = sfence
  loop: start=0, step=1, limit=4
  $region2: #{_fused_core.1} parent=0 // loop_pre_header
    _
  $region3: #{_fused_core.1} parent=0 // loop_header
    %s26 = sphi 0, %s30
    %p27 = scmp.ge.s32.totalorder %s26, 4
    %s36 = sphi 0, %s38
    %s39 = sphi 0, %s36
    %s40 = sphi 0, %s39
    %s56 = sphi 0, %s40
    %s64 = sphi 0, %s66
    %s67 = sphi 0, %s64
    %s68 = sphi 0, %s67
    %s84 = sphi 0, %s68
    %s92 = sphi 0, %s94
    %s95 = sphi 0, %s92
    %s96 = sphi 0, %s95
    %s112 = sphi 0, %s96
  $region4: #{_fused_core.1} parent=0 // loop_header_branch
    %29 = sbr.rel (%p27) target = $region8
  $region5: #{_fused_core.1} parent=0 // loop_body
    %s31 = ssub.s32 %s26, 1
    %s32 = ssub.s32 %s26, 2
    %s33 = sadd.s32 %s26, 1
    %s34 = ssub.s32 %s26, %s33
    %p35 = scmp.eq.s32.totalorder %s34, 0
    %s37 = sadd.s32 %s36, 1
    %s38 = scalar_select %p35, %s36, %s37
    %p41 = pneg %p35
    %p42 = scmp.eq.s32.totalorder %s26, 1
    %p43 = por %p41, %p42
    %p44 = scmp.ne.s32.totalorder %s36, %s39
    %p45 = scmp.eq.s32.totalorder %s26, 0
    %p46 = por %p44, %p45
    %p47 = scmp.ne.s32.totalorder %s36, %s39
    %p48 = scmp.eq.s32.totalorder %s31, 1
    %p49 = por %p47, %p48
    %p50 = scmp.ne.s32.totalorder %s39, %s40
    %p51 = scmp.eq.s32.totalorder %s31, 0
    %p52 = por %p50, %p51
    %p53 = scmp.ne.s32.totalorder %s39, %s40
    %p54 = scmp.eq.s32.totalorder %s32, 1
    %p55 = por %p53, %p54
    %p57 = scmp.ne.s32.totalorder %s40, %s56
    %p58 = scmp.eq.s32.totalorder %s32, 0
    %p59 = por %p57, %p58
    %s60 = sld [smem:[#allocation5 + %s26]]
    %s61 = sld [smem:[#allocation5 + %s33]]
    %s62 = ssub.s32 %s60, %s61
    %p63 = scmp.eq.s32.totalorder %s62, 0
    %s65 = sadd.s32 %s64, 1
    %s66 = scalar_select %p63, %s64, %s65
    %p69 = pneg %p63
    %p70 = scmp.eq.s32.totalorder %s26, 1
    %p71 = por %p69, %p70
    %p72 = scmp.ne.s32.totalorder %s64, %s67
    %p73 = scmp.eq.s32.totalorder %s26, 0
    %p74 = por %p72, %p73
    %p75 = scmp.ne.s32.totalorder %s64, %s67
    %p76 = scmp.eq.s32.totalorder %s31, 1
    %p77 = por %p75, %p76
    %p78 = scmp.ne.s32.totalorder %s67, %s68
    %p79 = scmp.eq.s32.totalorder %s31, 0
    %p80 = por %p78, %p79
    %p81 = scmp.ne.s32.totalorder %s67, %s68
    %p82 = scmp.eq.s32.totalorder %s32, 1
    %p83 = por %p81, %p82
    %p85 = scmp.ne.s32.totalorder %s68, %s84
    %p86 = scmp.eq.s32.totalorder %s32, 0
    %p87 = por %p85, %p86
    %s88 = sld [smem:[#allocation5 + %s26]]
    %s89 = sld [smem:[#allocation5 + %s33]]
    %s90 = ssub.s32 %s88, %s89
    %p91 = scmp.eq.s32.totalorder %s90, 0
    %s93 = sadd.s32 %s92, 1
    %s94 = scalar_select %p91, %s92, %s93
    %p97 = pneg %p91
    %p98 = scmp.eq.s32.totalorder %s26, 1
    %p99 = por %p97, %p98
    %p100 = scmp.ne.s32.totalorder %s92, %s95
    %p101 = scmp.eq.s32.totalorder %s26, 0
    %p102 = por %p100, %p101
    %p103 = scmp.ne.s32.totalorder %s92, %s95
    %p104 = scmp.eq.s32.totalorder %s31, 1
    %p105 = por %p103, %p104
    %p106 = scmp.ne.s32.totalorder %s95, %s96
    %p107 = scmp.eq.s32.totalorder %s31, 0
    %p108 = por %p106, %p107
    %p109 = scmp.ne.s32.totalorder %s95, %s96
    %p110 = scmp.eq.s32.totalorder %s32, 1
    %p111 = por %p109, %p110
    %p113 = scmp.ne.s32.totalorder %s96, %s112
    %p114 = scmp.eq.s32.totalorder %s32, 0
    %p115 = por %p113, %p114
    %p116 = scmp.le.s32.totalorder 1, %s26
    %p117 = scmp.lt.s32.totalorder %s26, 3
    %p118 = pnand %p116, %p117
    %p119 = pneg %p118
    // Predicated region
    $region9: #{_fused_core.1} parent=5 // pred_check
      _
    $region10: #{_fused_core.1} parent=5 // pred_check_branch
      %121 = sbr.rel (%p118) target = $region12
    $region11: #{_fused_core.1} parent=5 // pred_region
      %s122 = ssub.s32 %s26, 1
    $region12: #{_fused_core.1} parent=5 // pred_fallthru
      _
    %p123 = scmp.lt.s32.totalorder %s26, 2
    // Predicated region
    $region13: #{_fused_core.1} parent=5 // pred_check
      %p124 = pneg %p123
    $region14: #{_fused_core.1} parent=5 // pred_check_branch
      %126 = sbr.rel (%p124) target = $region16
    $region15: #{_fused_core.1} parent=5 // pred_region
      // Predicated region
      $region17: #{_fused_core.1} parent=15 // pred_check
        %p127 = pneg %p46
      $region18: #{_fused_core.1} parent=15 // pred_check_branch
        %129 = sbr.rel (%p127) target = $region20
      $region19: #{_fused_core.1} parent=15 // pred_region
        %p130 = scmp.lt.s32.totalorder %s26, 1
        %s131 = scalar_select %p130, %s26, 1
        %s132 = smul.addr %s131, 8
        %s133 = scalar_lea.vmem %s3, %s132
      $region20: #{_fused_core.1} parent=15 // pred_fallthru
        _
    $region16: #{_fused_core.1} parent=5 // pred_fallthru
      _
    %p134 = scmp.le.s32.totalorder 1, %s26
    %p135 = scmp.lt.s32.totalorder %s26, 3
    %p136 = pnand %p134, %p135
    %p137 = pneg %p136
    // Predicated region
    $region21: #{_fused_core.1} parent=5 // pred_check
      _
    $region22: #{_fused_core.1} parent=5 // pred_check_branch
      %139 = sbr.rel (%p136) target = $region24
    $region23: #{_fused_core.1} parent=5 // pred_region
      %s140 = ssub.s32 %s26, 1
      %p141 = scmp.lt.s32.totalorder %s31, 1
      %s142 = scalar_select %p141, %s31, 1
      %s143 = smul.addr %s142, 8
      %s144 = scalar_lea.vmem %s3, %s143
      %p145 = pneg %p52
      %p146 = pneg %p49
      %p147 = pneg %p80
      %p148 = pneg %p77
      %s149 = sld [smem:[#allocation5 + %s31]]
      %p150 = scmp.lt.s32.totalorder %s149, 1
      %s151 = scalar_select %p150, %s149, 1
      %s152 = smul.addr %s151, 8
      %s153 = scalar_lea.vmem %s4, %s152
      %p154 = pneg %p108
      %p155 = pneg %p105
      %s156 = sld [smem:[#allocation5 + %s31]]
      %p157 = scmp.lt.s32.totalorder %s156, 1
      %s158 = scalar_select %p157, %s156, 1
      %s159 = smul.addr %s158, 8
      %s160 = scalar_lea.vmem %s5, %s159
      %p161 = scmp.lt.s32.totalorder %s31, 1
      %s162 = scalar_select %p161, %s31, 1
      %s163 = smul.addr %s162, 8
      %s164 = scalar_lea.vmem %s3, %s163
      %s165 = sld [smem:[#allocation5 + %s31]]
      %p166 = scmp.lt.s32.totalorder %s165, 1
      %s167 = scalar_select %p166, %s165, 1
      %s168 = smul.addr %s167, 8
      %s169 = scalar_lea.vmem %s4, %s168
      %s170 = sld [smem:[#allocation5 + %s31]]
      %s171 = sld [smem:[#allocation5 + %s31]]
      %p172 = scmp.lt.s32.totalorder %s171, 1
      %s173 = scalar_select %p172, %s171, 1
      %s174 = smul.addr %s173, 8
      %s175 = scalar_lea.vmem %s5, %s174
      %s176 = sld [smem:[#allocation5 + %s31]]
      %s177 = sld [smem:[#allocation6 + %s31]]
      %p178 = scmp.eq.s32.totalorder %s177, 1
      // Predicated region
      $region25: #{_fused_core.1} parent=23 // pred_check
        %p179 = pneg %p178
      $region26: #{_fused_core.1} parent=23 // pred_check_branch
        %181 = sbr.rel (%p179) target = $region28
      $region27: #{_fused_core.1} parent=23 // pred_region
        %182 = vst [vmem:[#allocation2] sm:$0xff] 0.0
        %183 = vst [vmem:[#allocation3] sm:$0xff] 0.0
      $region28: #{_fused_core.1} parent=23 // pred_fallthru
        _
      %v184 = vld [vmem:[%s164] sm:$0xff]
      %v185 = vand.u32 2147483647, %v184
      %v186 = vld [vmem:[#allocation2] sm:$0xff]
      %v187 = vadd.f32 %v185, 0.0
      %v188 = vadd.f32 %v186, %v187
      %189 = vst [vmem:[#allocation2] sm:$0xff] %v188
      %v190 = vld [vmem:[#allocation3] sm:$0xff]
      %vm191 = vcmp.gt.f32.partialorder %v185, 0.0
      %v192 = vsel %vm191, 1.0, 0.0
      %v193 = vadd.f32 %v192, 0.0
      %v194 = vadd.f32 %v190, %v193
      %195 = vst [vmem:[#allocation3] sm:$0xff] %v194
      %s196 = sld [smem:[#allocation7 + %s31]]
      %p197 = scmp.eq.s32.totalorder %s196, 1
      // Predicated region
      $region29: #{_fused_core.1} parent=23 // pred_check
        %p198 = pneg %p197
      $region30: #{_fused_core.1} parent=23 // pred_check_branch
        %200 = sbr.rel (%p198) target = $region32
      $region31: #{_fused_core.1} parent=23 // pred_region
        %v201 = vld [vmem:[#allocation2] sm:$0xff]
        %202 = vst [vmem:[%s169] sm:$0xff] %v201
        %v203 = vld [vmem:[#allocation3] sm:$0xff]
        %204 = vst [vmem:[%s175] sm:$0xff] %v203
      $region32: #{_fused_core.1} parent=23 // pred_fallthru
        _
      %s205 = sld [smem:[#allocation5 + %s31]]
      %p206 = scmp.lt.s32.totalorder %s205, 1
      %s207 = scalar_select %p206, %s205, 1
      %s208 = smul.addr %s207, 8
      %s209 = scalar_lea.vmem %s4, %s208
      %s210 = sld [smem:[#allocation5 + %s31]]
      %p211 = scmp.lt.s32.totalorder %s210, 1
      %s212 = scalar_select %p211, %s210, 1
      %s213 = smul.addr %s212, 8
      %s214 = scalar_lea.vmem %s5, %s213
      // Predicated region
      $region33: #{_fused_core.1} parent=23 // pred_check
        %p215 = pneg %p77
      $region34: #{_fused_core.1} parent=23 // pred_check_branch
        %217 = sbr.rel (%p215) target = $region36
      $region35: #{_fused_core.1} parent=23 // pred_region
        %s218 = sld [smem:[#allocation5 + %s31]]
      $region36: #{_fused_core.1} parent=23 // pred_fallthru
        _
      // Predicated region
      $region37: #{_fused_core.1} parent=23 // pred_check
        %p219 = pneg %p105
      $region38: #{_fused_core.1} parent=23 // pred_check_branch
        %221 = sbr.rel (%p219) target = $region40
      $region39: #{_fused_core.1} parent=23 // pred_region
        %s222 = sld [smem:[#allocation5 + %s31]]
      $region40: #{_fused_core.1} parent=23 // pred_fallthru
        _
    $region24: #{_fused_core.1} parent=5 // pred_fallthru
      _
    %p223 = scmp.le.s32.totalorder 2, %s26
    // Predicated region
    $region41: #{_fused_core.1} parent=5 // pred_check
      %p224 = pneg %p223
    $region42: #{_fused_core.1} parent=5 // pred_check_branch
      %226 = sbr.rel (%p224) target = $region44
    $region43: #{_fused_core.1} parent=5 // pred_region
      %s227 = ssub.s32 %s26, 2
      // Predicated region
      $region45: #{_fused_core.1} parent=43 // pred_check
        %p228 = pneg %p83
      $region46: #{_fused_core.1} parent=43 // pred_check_branch
        %230 = sbr.rel (%p228) target = $region48
      $region47: #{_fused_core.1} parent=43 // pred_region
        %s231 = sld [smem:[#allocation5 + %s32]]
        %p232 = scmp.lt.s32.totalorder %s231, 1
        %s233 = scalar_select %p232, %s231, 1
        %s234 = smul.addr %s233, 8
        %s235 = scalar_lea.vmem %s4, %s234
      $region48: #{_fused_core.1} parent=43 // pred_fallthru
        _
      // Predicated region
      $region49: #{_fused_core.1} parent=43 // pred_check
        %p236 = pneg %p111
      $region50: #{_fused_core.1} parent=43 // pred_check_branch
        %238 = sbr.rel (%p236) target = $region52
      $region51: #{_fused_core.1} parent=43 // pred_region
        %s239 = sld [smem:[#allocation5 + %s32]]
        %p240 = scmp.lt.s32.totalorder %s239, 1
        %s241 = scalar_select %p240, %s239, 1
        %s242 = smul.addr %s241, 8
        %s243 = scalar_lea.vmem %s5, %s242
      $region52: #{_fused_core.1} parent=43 // pred_fallthru
        _
    $region44: #{_fused_core.1} parent=5 // pred_fallthru
      _
  $region6: #{_fused_core.1} parent=0 // loop_footer
    %s30 = sadd.s32 1, %s26
  $region7: #{_fused_core.1} parent=0 // loop_footer_branch
    %25 = sbr.rel target = $region3
  $region8: #{_fused_core.1} parent=0 // loop_exit
    _

</llo_original>
